<compile_context>
chip_gen: v6e
topology: v6e:2x2x1
jax: 0.10.0
libtpu: 0.0.40
codegen_flags: <defaults>
</compile_context>

<pallas_src>
import jax
import jax.numpy as jnp
import numpy as np
from jax.experimental import pallas as pl
from jax.experimental.pallas import tpu as pltpu

_ALPHA = 0.7   # focal_loss default
_GAMMA = 2.0   # focal_loss default (exponent written out as a square below)


def _bce_with_logits(x, y):
    """Stable elementwise binary_cross_entropy_with_logits (matches PyTorch)."""
    return jnp.maximum(x, 0.0) - x * y + jnp.log(1.0 + jnp.exp(-jnp.abs(x)))


def _criterion_kernel(est_ref, lab_ref, logits_ref, tgt_ref,
                      init_logit_ref, init_pm_ref, colmask_ref, out_ref):
    f32 = jnp.float32

    # ------------------------------ loss_assoc ------------------------------
    est = est_ref[...].astype(f32)                        # (Q, Q) pred_assoc logits
    lab = lab_ref[...].astype(f32)                        # (Q, Q) con_matrix (0/1)
    w = lab * 4.0 + (1.0 - lab)                           # weight = 4*y + (1-y)
    loss_assoc = jnp.mean(w * _bce_with_logits(est, lab))

    # ------------------------------ loss_bbox -------------------------------
    v = logits_ref.shape[-1]
    x = logits_ref[:, 1:, :].astype(f32)                  # (B, T-1, V) sliced in VMEM
    t = tgt_ref[:, 1:, :].astype(f32)                     # (B, T-1, V)
    m = jnp.max(x, axis=-1, keepdims=True)
    lse = m + jnp.log(jnp.sum(jnp.exp(x - m), axis=-1, keepdims=True))   # (B, T-1, 1)
    sum_t = jnp.sum(t, axis=-1, keepdims=True)
    sum_tx = jnp.sum(t * x, axis=-1, keepdims=True)
    # mean_V(-t * log_softmax(x)) == (lse * sum(t) - sum(t*x)) / V  (no log_softmax temp)
    row_loss = (lse * sum_t - sum_tx) * (1.0 / float(v))
    loss_bbox = jnp.mean(row_loss)

    # --------------------------- loss_init_points ---------------------------
    xl = init_logit_ref[0].astype(f32)                    # (H, W) init-point logits
    acc = jnp.sum(init_pm_ref[...].astype(f32), axis=0)   # targets.sum(0)  -> (H, W)
    y = (jnp.clip(acc, 0.0, 1.0) > 0.5).astype(f32)
    e = jnp.exp(-jnp.abs(xl))                             # exp(-|x|), reused below
    one_p_e = 1.0 + e
    bce = jnp.maximum(xl, 0.0) - xl * y + jnp.log(one_p_e)
    # pt = exp(-bce) == sigmoid(x) if y==1 else 1-sigmoid(x); reuse e -> no second exp.
    s = pl.reciprocal(one_p_e)                            # sigmoid(|x|); approx=True viable
    p = jnp.where(xl >= 0.0, s, 1.0 - s)                  # sigmoid(x)
    pt = jnp.where(y > 0.5, p, 1.0 - p)
    at = _ALPHA * (1.0 - y) + (1.0 - _ALPHA) * y          # torch: [alpha, 1-alpha][label]
    one_minus_pt = 1.0 - pt
    focal = at * one_minus_pt * one_minus_pt * bce        # gamma == 2
    # (focal * mask.unsqueeze(1)).mean() == mean_{j,k}(focal[j,k] * mean_i(mask[i,k]))
    loss_init = jnp.mean(focal * colmask_ref[...])        # colmask: (1, W) column means

    out_ref[0] = loss_assoc
    out_ref[1] = loss_bbox
    out_ref[2] = loss_init


def _criterion_pallas(est, lab, logits, tgts, init_logits, init_pm, col_mask):
    q0, q1 = est.shape
    b, t, v = logits.shape
    lead, hi, wi = init_logits.shape
    k = init_pm.shape[0]

    n_assoc = q0 * q1
    n_bbox = b * (t - 1) * v
    n_init = hi * wi
    bytes_accessed = int(sum(a.size * a.dtype.itemsize
                             for a in (est, lab, logits, tgts, init_logits, init_pm, col_mask)) + 3 * 4)
    cost = pl.CostEstimate(
        flops=10 * n_assoc + 8 * n_bbox + (16 + 2 * k) * n_init,
        transcendentals=2 * n_assoc + n_bbox + b * (t - 1) + 3 * n_init,
        bytes_accessed=bytes_accessed,
    )

    return pl.pallas_call(
        _criterion_kernel,
        out_shape=jax.ShapeDtypeStruct((3,), jnp.float32),
        grid=(1,),
        in_specs=[
            pl.BlockSpec((q0, q1), lambda i: (0, 0)),
            pl.BlockSpec((q0, q1), lambda i: (0, 0)),
            pl.BlockSpec((b, t, v), lambda i: (0, 0, 0)),
            pl.BlockSpec((b, t, v), lambda i: (0, 0, 0)),
            pl.BlockSpec((lead, hi, wi), lambda i: (0, 0, 0)),
            pl.BlockSpec((k, hi, wi), lambda i: (0, 0, 0)),
            pl.BlockSpec((1, wi), lambda i: (0, 0)),
        ],
        out_specs=pl.BlockSpec(memory_space=pltpu.MemorySpace.SMEM),
        cost_estimate=cost,
    )(est, lab, logits, tgts, init_logits, init_pm, col_mask)


def set_criterion_forward(outputs, targets, dt_targets):
    """SetCriterion.forward for losses = ('assoc', 'boxes', 'loss_init_points')."""
    est = outputs["pred_assoc"]                       # (Q, Q) raw dtype; cast in-kernel
    lab = targets[0]["con_matrix"]                    # (Q, Q)
    logits = outputs["logits"]                        # (B, T, V) raw; sliced in-kernel
    init_logits = outputs["pred_init_point"]          # (1, HI, WI)
    init_pm = targets[0]["init_point_matrix"]         # (K, HI, WI)
    mask = targets[0]["mask"]                         # (1, HM, WM)

    wi = init_logits.shape[-1]                        # torch uses size=(100, 100)
    # Only mean_rows(F.interpolate(mask, (100,100))) is consumed; the row-mean commutes
    # with the separable bilinear resize, so resize the 1-D row-mean (HM -> 100) instead.
    row_mean = jnp.mean(mask.astype(jnp.float32), axis=1)                      # (1, WM)
    col_mask = jax.image.resize(row_mean, (1, wi), method="bilinear", antialias=False)

    out = _criterion_pallas(est, lab, logits, dt_targets, init_logits, init_pm, col_mask)
    return {"loss_assoc": out[0], "loss_bbox": out[1], "loss_init_points": out[2]}


def _reference_forward(outputs, targets, dt_targets):
    """Pure-JAX reference mirroring the literal PyTorch math (incl. mask broadcast)."""
    f32 = jnp.float32
    # loss_assoc
    est = outputs["pred_assoc"].astype(f32)
    lab = targets[0]["con_matrix"].astype(f32)
    w = lab * 4.0 + (1.0 - lab)
    loss_assoc = jnp.mean(w * _bce_with_logits(est, lab))
    # loss_bbox
    logits = outputs["logits"].astype(f32)
    v = logits.shape[-1]
    x = logits[:, 1:, :].reshape(-1, v)
    t = dt_targets.astype(f32)[:, 1:, :].reshape(-1, v)
    lsm = jax.nn.log_softmax(x, axis=1)
    loss_bbox = jnp.mean(jnp.mean(-t * lsm, axis=1))
    # loss_init_points
    lg = outputs["pred_init_point"].astype(f32)                  # (1, H, W)
    pm = targets[0]["init_point_matrix"].astype(f32)             # (K, H, W)
    tgt = jnp.clip(jnp.sum(pm, axis=0), 0.0, 1.0)[None]          # (1, H, W)
    y = (tgt > 0.5).astype(f32)
    msk = jax.image.resize(targets[0]["mask"].astype(f32)[0], (100, 100),
                           method="bilinear", antialias=False)
    bce = _bce_with_logits(lg, y)
    pt = jnp.exp(-bce)
    at = jnp.where(y > 0.5, 1.0 - _ALPHA, _ALPHA)
    focal = at * (1.0 - pt) ** 2 * bce                           # (1, H, W)
    weighted = focal * msk[:, None, :]                           # literal torch broadcast -> (H, H, W)
    loss_init = jnp.mean(weighted)
    return {"loss_assoc": loss_assoc, "loss_bbox": loss_bbox, "loss_init_points": loss_init}


if __name__ == "__main__":
    key = jax.random.PRNGKey(0)
    ks = jax.random.split(key, 7)

    Q = 50                       # polyline nodes -> con_matrix / pred_assoc are (Q, Q)
    B, T = 1, 8                  # batch, vertex time steps
    GRID = 50                    # self.grid_size
    V = GRID * GRID + 1          # vertex-class vocabulary (grid**2 + EOS) = 2501
    K = 4                        # init-point instance maps
    HM = WM = 50                 # raw mask resolution (interpolated to 100x100)
    HI = WI = 100                # init-point heat-map resolution

    outputs = {
        "pred_assoc": jax.random.normal(ks[0], (Q, Q), jnp.float32),
        "logits": jax.random.normal(ks[1], (B, T, V), jnp.float32),
        "pred_init_point": jax.random.normal(ks[2], (1, HI, WI), jnp.float32),
    }
    targets = [{
        "con_matrix": (jax.random.uniform(ks[3], (Q, Q)) > 0.8).astype(jnp.float32),
        "init_point_matrix": (jax.random.uniform(ks[4], (K, HI, WI)) > 0.995).astype(jnp.float32),
        "mask": (jax.random.uniform(ks[5], (1, HM, WM)) > 0.3).astype(jnp.float32),
    }]
    # Stand-in for utils.dt_targets_from_class (host-side numpy): row-normalized soft targets.
    raw = jax.random.uniform(ks[6], (B, T, V), jnp.float32)
    dt_targets = raw / jnp.sum(raw, axis=-1, keepdims=True)

    losses = jax.jit(set_criterion_forward)(outputs, targets, dt_targets)
    losses = jax.block_until_ready(losses)

    ref = _reference_forward(outputs, targets, dt_targets)
    for name in ("loss_assoc", "loss_bbox", "loss_init_points"):
        np.testing.assert_allclose(np.asarray(losses[name]), np.asarray(ref[name]),
                                   atol=1e-5, rtol=1e-5)

    print("KERNEL_OK")
</pallas_src>

<mosaic_0001>
module attributes {stable_mosaic.version = 11 : i64} {
  func.func @_criterion_kernel(%arg0: i32, %arg1: memref<50x50xf32, #tpu.memory_space<vmem>>, %arg2: memref<50x50xf32, #tpu.memory_space<vmem>>, %arg3: memref<1x8x2501xf32, #tpu.memory_space<vmem>>, %arg4: memref<1x8x2501xf32, #tpu.memory_space<vmem>>, %arg5: memref<1x100x100xf32, #tpu.memory_space<vmem>>, %arg6: memref<4x100x100xf32, #tpu.memory_space<vmem>>, %arg7: memref<1x100xf32, #tpu.memory_space<vmem>>, %arg8: memref<3xf32, #tpu.memory_space<smem>>) attributes {dimension_semantics = [#tpu.dimension_semantics<arbitrary>], iteration_bounds = array<i64: 1>, scalar_prefetch = 0 : i64, scratch_operands = 0 : i64, tpu.core_type = #tpu.core_type<tc>, window_params = [{pipeline_mode = #tpu.pipeline_mode<synchronous>, transform_indices = @transform_0, window_bounds = array<i64: 50, 50>}, {pipeline_mode = #tpu.pipeline_mode<synchronous>, transform_indices = @transform_1, window_bounds = array<i64: 50, 50>}, {pipeline_mode = #tpu.pipeline_mode<synchronous>, transform_indices = @transform_2, window_bounds = array<i64: 1, 8, 2501>}, {pipeline_mode = #tpu.pipeline_mode<synchronous>, transform_indices = @transform_3, window_bounds = array<i64: 1, 8, 2501>}, {pipeline_mode = #tpu.pipeline_mode<synchronous>, transform_indices = @transform_4, window_bounds = array<i64: 1, 100, 100>}, {pipeline_mode = #tpu.pipeline_mode<synchronous>, transform_indices = @transform_5, window_bounds = array<i64: 4, 100, 100>}, {pipeline_mode = #tpu.pipeline_mode<synchronous>, transform_indices = @transform_6, window_bounds = array<i64: 1, 100>}, {transform_indices = @transform_7, window_bounds = array<i64: 3>}]} {
    %c0 = arith.constant 0 : index
    %c0_0 = arith.constant 0 : index
    %0 = vector.load %arg1[%c0, %c0_0] : memref<50x50xf32, #tpu.memory_space<vmem>>, vector<50x50xf32>
    %c0_1 = arith.constant 0 : index
    %c0_2 = arith.constant 0 : index
    %1 = vector.load %arg2[%c0_1, %c0_2] : memref<50x50xf32, #tpu.memory_space<vmem>>, vector<50x50xf32>
    %cst = arith.constant 4.000000e+00 : f32
    %2 = vector.broadcast %cst : f32 to vector<50x50xf32>
    %3 = arith.mulf %1, %2 : vector<50x50xf32>
    %cst_3 = arith.constant 1.000000e+00 : f32
    %4 = vector.broadcast %cst_3 : f32 to vector<50x50xf32>
    %5 = arith.subf %4, %1 : vector<50x50xf32>
    %6 = arith.addf %3, %5 : vector<50x50xf32>
    %cst_4 = arith.constant 0.000000e+00 : f32
    %7 = vector.broadcast %cst_4 : f32 to vector<50x50xf32>
    %8 = arith.maximumf %0, %7 : vector<50x50xf32>
    %9 = arith.mulf %0, %1 : vector<50x50xf32>
    %10 = arith.subf %8, %9 : vector<50x50xf32>
    %11 = math.absf %0 : vector<50x50xf32>
    %cst_5 = arith.constant 0.000000e+00 : f32
    %12 = vector.broadcast %cst_5 : f32 to vector<50x50xf32>
    %13 = arith.subf %12, %11 : vector<50x50xf32>
    %14 = math.exp %13 : vector<50x50xf32>
    %cst_6 = arith.constant 1.000000e+00 : f32
    %15 = vector.broadcast %cst_6 : f32 to vector<50x50xf32>
    %16 = arith.addf %15, %14 : vector<50x50xf32>
    %17 = math.log %16 : vector<50x50xf32>
    %18 = arith.addf %10, %17 : vector<50x50xf32>
    %19 = arith.mulf %6, %18 : vector<50x50xf32>
    %20 = vector.shape_cast %19 : vector<50x50xf32> to vector<1x50x50xf32>
    %cst_7 = arith.constant dense<0.000000e+00> : vector<1xf32>
    %21 = vector.multi_reduction <add>, %20, %cst_7 [1, 2] : vector<1x50x50xf32> to vector<1xf32>
    %22 = vector.shape_cast %21 : vector<1xf32> to vector<1x1x1xf32>
    %23 = vector.extract %22[0, 0, 0] : f32 from vector<1x1x1xf32>
    %cst_8 = arith.constant 2.500000e+03 : f32
    %24 = arith.divf %23, %cst_8 : f32
    %c0_9 = arith.constant 0 : index
    %c1 = arith.constant 1 : index
    %c0_10 = arith.constant 0 : index
    %25 = vector.load %arg3[%c0_9, %c1, %c0_10] : memref<1x8x2501xf32, #tpu.memory_space<vmem>>, vector<1x7x2501xf32>
    %c0_11 = arith.constant 0 : index
    %c1_12 = arith.constant 1 : index
    %c0_13 = arith.constant 0 : index
    %26 = vector.load %arg4[%c0_11, %c1_12, %c0_13] : memref<1x8x2501xf32, #tpu.memory_space<vmem>>, vector<1x7x2501xf32>
    %cst_14 = arith.constant dense<0xFF800000> : vector<1x7xf32>
    %27 = vector.multi_reduction <maximumf>, %25, %cst_14 [2] : vector<1x7x2501xf32> to vector<1x7xf32>
    %28 = vector.shape_cast %27 : vector<1x7xf32> to vector<1x7x1xf32>
    %29 = vector.broadcast %28 : vector<1x7x1xf32> to vector<1x7x2501xf32>
    %30 = arith.subf %25, %29 : vector<1x7x2501xf32>
    %31 = math.exp %30 : vector<1x7x2501xf32>
    %cst_15 = arith.constant dense<0.000000e+00> : vector<1x7xf32>
    %32 = vector.multi_reduction <add>, %31, %cst_15 [2] : vector<1x7x2501xf32> to vector<1x7xf32>
    %33 = vector.shape_cast %32 : vector<1x7xf32> to vector<1x7x1xf32>
    %34 = math.log %33 : vector<1x7x1xf32>
    %35 = arith.addf %28, %34 : vector<1x7x1xf32>
    %cst_16 = arith.constant dense<0.000000e+00> : vector<1x7xf32>
    %36 = vector.multi_reduction <add>, %26, %cst_16 [2] : vector<1x7x2501xf32> to vector<1x7xf32>
    %37 = vector.shape_cast %36 : vector<1x7xf32> to vector<1x7x1xf32>
    %38 = arith.mulf %26, %25 : vector<1x7x2501xf32>
    %cst_17 = arith.constant dense<0.000000e+00> : vector<1x7xf32>
    %39 = vector.multi_reduction <add>, %38, %cst_17 [2] : vector<1x7x2501xf32> to vector<1x7xf32>
    %40 = vector.shape_cast %39 : vector<1x7xf32> to vector<1x7x1xf32>
    %41 = arith.mulf %35, %37 : vector<1x7x1xf32>
    %42 = arith.subf %41, %40 : vector<1x7x1xf32>
    %cst_18 = arith.constant 3.99840064E-4 : f32
    %43 = vector.broadcast %cst_18 : f32 to vector<1x7x1xf32>
    %44 = arith.mulf %42, %43 : vector<1x7x1xf32>
    %45 = vector.shape_cast %44 : vector<1x7x1xf32> to vector<1x1x7x1xf32>
    %cst_19 = arith.constant dense<0.000000e+00> : vector<1xf32>
    %46 = vector.multi_reduction <add>, %45, %cst_19 [1, 2, 3] : vector<1x1x7x1xf32> to vector<1xf32>
    %47 = vector.shape_cast %46 : vector<1xf32> to vector<1x1x1x1xf32>
    %48 = vector.extract %47[0, 0, 0, 0] : f32 from vector<1x1x1x1xf32>
    %cst_20 = arith.constant 7.000000e+00 : f32
    %49 = arith.divf %48, %cst_20 : f32
    %c0_21 = arith.constant 0 : index
    %c0_22 = arith.constant 0 : index
    %c0_23 = arith.constant 0 : index
    %50 = vector.load %arg5[%c0_21, %c0_22, %c0_23] : memref<1x100x100xf32, #tpu.memory_space<vmem>>, vector<1x100x100xf32>
    %51 = vector.shape_cast %50 : vector<1x100x100xf32> to vector<100x100xf32>
    %c0_24 = arith.constant 0 : index
    %c0_25 = arith.constant 0 : index
    %c0_26 = arith.constant 0 : index
    %52 = vector.load %arg6[%c0_24, %c0_25, %c0_26] : memref<4x100x100xf32, #tpu.memory_space<vmem>>, vector<4x100x100xf32>
    %cst_27 = arith.constant dense<0.000000e+00> : vector<100x100xf32>
    %53 = vector.multi_reduction <add>, %52, %cst_27 [0] : vector<4x100x100xf32> to vector<100x100xf32>
    %cst_28 = arith.constant 0.000000e+00 : f32
    %cst_29 = arith.constant 1.000000e+00 : f32
    %54 = vector.broadcast %cst_28 : f32 to vector<100x100xf32>
    %55 = arith.maximumf %54, %53 : vector<100x100xf32>
    %56 = vector.broadcast %cst_29 : f32 to vector<100x100xf32>
    %57 = arith.minimumf %56, %55 : vector<100x100xf32>
    %cst_30 = arith.constant 5.000000e-01 : f32
    %58 = vector.broadcast %cst_30 : f32 to vector<100x100xf32>
    %59 = arith.cmpf ogt, %57, %58 : vector<100x100xf32>
    %60 = arith.extui %59 : vector<100x100xi1> to vector<100x100xi32>
    %61 = arith.sitofp %60 : vector<100x100xi32> to vector<100x100xf32>
    %62 = math.absf %51 : vector<100x100xf32>
    %cst_31 = arith.constant 0.000000e+00 : f32
    %63 = vector.broadcast %cst_31 : f32 to vector<100x100xf32>
    %64 = arith.subf %63, %62 : vector<100x100xf32>
    %65 = math.exp %64 : vector<100x100xf32>
    %cst_32 = arith.constant 1.000000e+00 : f32
    %66 = vector.broadcast %cst_32 : f32 to vector<100x100xf32>
    %67 = arith.addf %66, %65 : vector<100x100xf32>
    %cst_33 = arith.constant 0.000000e+00 : f32
    %68 = vector.broadcast %cst_33 : f32 to vector<100x100xf32>
    %69 = arith.maximumf %51, %68 : vector<100x100xf32>
    %70 = arith.mulf %51, %61 : vector<100x100xf32>
    %71 = arith.subf %69, %70 : vector<100x100xf32>
    %72 = math.log %67 : vector<100x100xf32>
    %73 = arith.addf %71, %72 : vector<100x100xf32>
    %74 = tpu.reciprocal %67 : vector<100x100xf32> -> vector<100x100xf32>
    %cst_34 = arith.constant 0.000000e+00 : f32
    %75 = vector.broadcast %cst_34 : f32 to vector<100x100xf32>
    %76 = arith.cmpf oge, %51, %75 : vector<100x100xf32>
    %cst_35 = arith.constant 1.000000e+00 : f32
    %77 = vector.broadcast %cst_35 : f32 to vector<100x100xf32>
    %78 = arith.subf %77, %74 : vector<100x100xf32>
    %79 = arith.select %76, %74, %78 : vector<100x100xi1>, vector<100x100xf32>
    %cst_36 = arith.constant 5.000000e-01 : f32
    %80 = vector.broadcast %cst_36 : f32 to vector<100x100xf32>
    %81 = arith.cmpf ogt, %61, %80 : vector<100x100xf32>
    %cst_37 = arith.constant 1.000000e+00 : f32
    %82 = vector.broadcast %cst_37 : f32 to vector<100x100xf32>
    %83 = arith.subf %82, %79 : vector<100x100xf32>
    %84 = arith.select %81, %79, %83 : vector<100x100xi1>, vector<100x100xf32>
    %cst_38 = arith.constant 1.000000e+00 : f32
    %85 = vector.broadcast %cst_38 : f32 to vector<100x100xf32>
    %86 = arith.subf %85, %61 : vector<100x100xf32>
    %cst_39 = arith.constant 0.699999988 : f32
    %87 = vector.broadcast %cst_39 : f32 to vector<100x100xf32>
    %88 = arith.mulf %87, %86 : vector<100x100xf32>
    %cst_40 = arith.constant 3.000000e-01 : f32
    %89 = vector.broadcast %cst_40 : f32 to vector<100x100xf32>
    %90 = arith.mulf %89, %61 : vector<100x100xf32>
    %91 = arith.addf %88, %90 : vector<100x100xf32>
    %cst_41 = arith.constant 1.000000e+00 : f32
    %92 = vector.broadcast %cst_41 : f32 to vector<100x100xf32>
    %93 = arith.subf %92, %84 : vector<100x100xf32>
    %94 = arith.mulf %91, %93 : vector<100x100xf32>
    %95 = arith.mulf %94, %93 : vector<100x100xf32>
    %96 = arith.mulf %95, %73 : vector<100x100xf32>
    %c0_42 = arith.constant 0 : index
    %c0_43 = arith.constant 0 : index
    %97 = vector.load %arg7[%c0_42, %c0_43] : memref<1x100xf32, #tpu.memory_space<vmem>>, vector<1x100xf32>
    %98 = vector.broadcast %97 : vector<1x100xf32> to vector<100x100xf32>
    %99 = arith.mulf %96, %98 : vector<100x100xf32>
    %100 = vector.shape_cast %99 : vector<100x100xf32> to vector<1x100x100xf32>
    %cst_44 = arith.constant dense<0.000000e+00> : vector<1xf32>
    %101 = vector.multi_reduction <add>, %100, %cst_44 [1, 2] : vector<1x100x100xf32> to vector<1xf32>
    %102 = vector.shape_cast %101 : vector<1xf32> to vector<1x1x1xf32>
    %103 = vector.extract %102[0, 0, 0] : f32 from vector<1x1x1xf32>
    %cst_45 = arith.constant 1.000000e+04 : f32
    %104 = arith.divf %103, %cst_45 : f32
    %c0_46 = arith.constant 0 : index
    %105 = memref.load %arg8[%c0_46] : memref<3xf32, #tpu.memory_space<smem>>
    memref.store %24, %arg8[%c0_46] : memref<3xf32, #tpu.memory_space<smem>>
    %c1_47 = arith.constant 1 : index
    %106 = memref.load %arg8[%c1_47] : memref<3xf32, #tpu.memory_space<smem>>
    memref.store %49, %arg8[%c1_47] : memref<3xf32, #tpu.memory_space<smem>>
    %c2 = arith.constant 2 : index
    %107 = memref.load %arg8[%c2] : memref<3xf32, #tpu.memory_space<smem>>
    memref.store %104, %arg8[%c2] : memref<3xf32, #tpu.memory_space<smem>>
    return
  }
  func.func @transform_0(%arg0: i32) -> (i32, i32) {
    %c0_i32 = arith.constant 0 : i32
    %c0_i32_0 = arith.constant 0 : i32
    %c0_i32_1 = arith.constant 0 : i32
    return %c0_i32, %c0_i32_0 : i32, i32
  }
  func.func @transform_1(%arg0: i32) -> (i32, i32) {
    %c0_i32 = arith.constant 0 : i32
    %c0_i32_0 = arith.constant 0 : i32
    %c0_i32_1 = arith.constant 0 : i32
    return %c0_i32, %c0_i32_0 : i32, i32
  }
  func.func @transform_2(%arg0: i32) -> (i32, i32, i32) {
    %c0_i32 = arith.constant 0 : i32
    %c0_i32_0 = arith.constant 0 : i32
    %c0_i32_1 = arith.constant 0 : i32
    %c0_i32_2 = arith.constant 0 : i32
    return %c0_i32, %c0_i32_0, %c0_i32_1 : i32, i32, i32
  }
  func.func @transform_3(%arg0: i32) -> (i32, i32, i32) {
    %c0_i32 = arith.constant 0 : i32
    %c0_i32_0 = arith.constant 0 : i32
    %c0_i32_1 = arith.constant 0 : i32
    %c0_i32_2 = arith.constant 0 : i32
    return %c0_i32, %c0_i32_0, %c0_i32_1 : i32, i32, i32
  }
  func.func @transform_4(%arg0: i32) -> (i32, i32, i32) {
    %c0_i32 = arith.constant 0 : i32
    %c0_i32_0 = arith.constant 0 : i32
    %c0_i32_1 = arith.constant 0 : i32
    %c0_i32_2 = arith.constant 0 : i32
    return %c0_i32, %c0_i32_0, %c0_i32_1 : i32, i32, i32
  }
  func.func @transform_5(%arg0: i32) -> (i32, i32, i32) {
    %c0_i32 = arith.constant 0 : i32
    %c0_i32_0 = arith.constant 0 : i32
    %c0_i32_1 = arith.constant 0 : i32
    %c0_i32_2 = arith.constant 0 : i32
    return %c0_i32, %c0_i32_0, %c0_i32_1 : i32, i32, i32
  }
  func.func @transform_6(%arg0: i32) -> (i32, i32) {
    %c0_i32 = arith.constant 0 : i32
    %c0_i32_0 = arith.constant 0 : i32
    %c0_i32_1 = arith.constant 0 : i32
    return %c0_i32, %c0_i32_0 : i32, i32
  }
  func.func @transform_7(%arg0: i32) -> i32 {
    %c0_i32 = arith.constant 0 : i32
    %c0_i32_0 = arith.constant 0 : i32
    return %c0_i32 : i32
  }
}

</mosaic_0001>

<llo_original>
// kernel: set_criterion_forward.1
$region0: #{set_criterion_forward.1}
  #allocation0 [shape = 'u32[]', space=smem, size = 0x4, offset = 0x4, fixed_abs, tag = 'smem constant byte address 0x4 - core index']
  #allocation1 [shape = 'u32[144,128]{1,0:T(1,128)}', space=vmem, size = 0x12000, scoped, tag = 'internal scratch']
  %s0 = inlined_call_operand.vmem [shape: f32[50,50], index: 0, kind: input, shape index: {}]
  %s1 = inlined_call_operand.vmem [shape: f32[50,50], index: 1, kind: input, shape index: {}]
  %s2 = inlined_call_operand.vmem [shape: f32[1,8,2501], index: 2, kind: input, shape index: {}]
  %s3 = inlined_call_operand.vmem [shape: f32[1,8,2501], index: 3, kind: input, shape index: {}]
  %s4 = inlined_call_operand.vmem [shape: f32[1,100,100], index: 4, kind: input, shape index: {}]
  %s5 = inlined_call_operand.vmem [shape: f32[4,100,100], index: 5, kind: input, shape index: {}]
  %s6 = inlined_call_operand.vmem [shape: f32[1,100], index: 6, kind: input, shape index: {}]
  %s7 = inlined_call_operand.vmem [shape: f32[3], index: 7, kind: output, shape index: {}]
  %s8 = sld [smem:[#allocation0]]
  $region38: #{set_criterion_forward.1} parent=0
    _
  %s10 = ssub.s32 1, %s8
  %s11 = scalar_select 0, %s10, %s8
  $region1: #{set_criterion_forward.1} parent=0
    #allocation2 [shape = 'u8[512]{0}', space=smem, size = 0x200, scoped, tag = 'output window, operand 0, single buffered']
    #allocation3 [shape = 's32[1]{0}', space=sflag, size = 0x4, scoped, tag = 'scoped memory for set_criterion_forward.1']
    %12 = vsyncpa [#allocation3], 0
    // Predicated region
    $region2: #{set_criterion_forward.1} parent=1 // pred_check
      _
    $region3: #{set_criterion_forward.1} parent=1 // pred_check_branch
      %14 = sbr.rel (0) target = $region5
    $region4: #{set_criterion_forward.1} parent=1 // pred_region
      _
    $region5: #{set_criterion_forward.1} parent=1 // pred_fallthru
      _
    // Predicated region
    $region6: #{set_criterion_forward.1} parent=1 // pred_check
      _
    $region7: #{set_criterion_forward.1} parent=1 // pred_check_branch
      %16 = sbr.rel (0) target = $region9
    $region8: #{set_criterion_forward.1} parent=1 // pred_region
      _
    $region9: #{set_criterion_forward.1} parent=1 // pred_fallthru
      _
    // Predicated region
    $region10: #{set_criterion_forward.1} parent=1 // pred_check
      _
    $region11: #{set_criterion_forward.1} parent=1 // pred_check_branch
      %18 = sbr.rel (0) target = $region13
    $region12: #{set_criterion_forward.1} parent=1 // pred_region
      _
    $region13: #{set_criterion_forward.1} parent=1 // pred_fallthru
      _
    // Predicated region
    $region14: #{set_criterion_forward.1} parent=1 // pred_check
      _
    $region15: #{set_criterion_forward.1} parent=1 // pred_check_branch
      %20 = sbr.rel (0) target = $region17
    $region16: #{set_criterion_forward.1} parent=1 // pred_region
      _
    $region17: #{set_criterion_forward.1} parent=1 // pred_fallthru
      _
    // Predicated region
    $region18: #{set_criterion_forward.1} parent=1 // pred_check
      _
    $region19: #{set_criterion_forward.1} parent=1 // pred_check_branch
      %22 = sbr.rel (0) target = $region21
    $region20: #{set_criterion_forward.1} parent=1 // pred_region
      _
    $region21: #{set_criterion_forward.1} parent=1 // pred_fallthru
      _
    // Predicated region
    $region22: #{set_criterion_forward.1} parent=1 // pred_check
      _
    $region23: #{set_criterion_forward.1} parent=1 // pred_check_branch
      %24 = sbr.rel (0) target = $region25
    $region24: #{set_criterion_forward.1} parent=1 // pred_region
      _
    $region25: #{set_criterion_forward.1} parent=1 // pred_fallthru
      _
    // Predicated region
    $region26: #{set_criterion_forward.1} parent=1 // pred_check
      _
    $region27: #{set_criterion_forward.1} parent=1 // pred_check_branch
      %26 = sbr.rel (0) target = $region29
    $region28: #{set_criterion_forward.1} parent=1 // pred_region
      _
    $region29: #{set_criterion_forward.1} parent=1 // pred_fallthru
      _
    %v27 = vld [vmem:[%s0] sm:$0xff]
    %v28 = vld [vmem:[%s0 + $0x8] sm:$0xff]
    %v29 = vld [vmem:[%s0 + $0x10] sm:$0xff]
    %v30 = vld [vmem:[%s0 + $0x18] sm:$0xff]
    %v31 = vld [vmem:[%s0 + $0x20] sm:$0xff]
    %v32 = vld [vmem:[%s0 + $0x28] sm:$0xff]
    %v33 = vld [vmem:[%s0 + $0x30] sm:$0x3]
    %v34 = vld [vmem:[%s1] sm:$0xff]
    %v35 = vld [vmem:[%s1 + $0x8] sm:$0xff]
    %v36 = vld [vmem:[%s1 + $0x10] sm:$0xff]
    %v37 = vld [vmem:[%s1 + $0x18] sm:$0xff]
    %v38 = vld [vmem:[%s1 + $0x20] sm:$0xff]
    %v39 = vld [vmem:[%s1 + $0x28] sm:$0xff]
    %v40 = vld [vmem:[%s1 + $0x30] sm:$0x3]
    %v41 = vmul.f32 %v34, 4.0
    %v42 = vmul.f32 %v35, 4.0
    %v43 = vmul.f32 %v36, 4.0
    %v44 = vmul.f32 %v37, 4.0
    %v45 = vmul.f32 %v38, 4.0
    %v46 = vmul.f32 %v39, 4.0
    %v47 = vmul.f32 %v40, 4.0
    %v48 = vsub.f32 1.0, %v34
    %v49 = vsub.f32 1.0, %v35
    %v50 = vsub.f32 1.0, %v36
    %v51 = vsub.f32 1.0, %v37
    %v52 = vsub.f32 1.0, %v38
    %v53 = vsub.f32 1.0, %v39
    %v54 = vsub.f32 1.0, %v40
    %v55 = vadd.f32 %v41, %v48
    %v56 = vadd.f32 %v42, %v49
    %v57 = vadd.f32 %v43, %v50
    %v58 = vadd.f32 %v44, %v51
    %v59 = vadd.f32 %v45, %v52
    %v60 = vadd.f32 %v46, %v53
    %v61 = vadd.f32 %v47, %v54
    %v62 = vmax.f32 %v27, 0.0
    %v63 = vmax.f32 %v28, 0.0
    %v64 = vmax.f32 %v29, 0.0
    %v65 = vmax.f32 %v30, 0.0
    %v66 = vmax.f32 %v31, 0.0
    %v67 = vmax.f32 %v32, 0.0
    %v68 = vmax.f32 %v33, 0.0
    %v69 = vmul.f32 %v27, %v34
    %v70 = vmul.f32 %v28, %v35
    %v71 = vmul.f32 %v29, %v36
    %v72 = vmul.f32 %v30, %v37
    %v73 = vmul.f32 %v31, %v38
    %v74 = vmul.f32 %v32, %v39
    %v75 = vmul.f32 %v33, %v40
    %v76 = vsub.f32 %v62, %v69
    %v77 = vsub.f32 %v63, %v70
    %v78 = vsub.f32 %v64, %v71
    %v79 = vsub.f32 %v65, %v72
    %v80 = vsub.f32 %v66, %v73
    %v81 = vsub.f32 %v67, %v74
    %v82 = vsub.f32 %v68, %v75
    %v83 = vand.u32 2147483647, %v27
    %v84 = vand.u32 2147483647, %v28
    %v85 = vand.u32 2147483647, %v29
    %v86 = vand.u32 2147483647, %v30
    %v87 = vand.u32 2147483647, %v31
    %v88 = vand.u32 2147483647, %v32
    %v89 = vand.u32 2147483647, %v33
    %v90 = vsub.f32 0.0, %v83
    %v91 = vsub.f32 0.0, %v84
    %v92 = vsub.f32 0.0, %v85
    %v93 = vsub.f32 0.0, %v86
    %v94 = vsub.f32 0.0, %v87
    %v95 = vsub.f32 0.0, %v88
    %v96 = vsub.f32 0.0, %v89
    %v97 = vmul.f32 %v90, 1.442695
    %v98 = vpow.pop %v97
    %v99 = vmul.f32 %v91, 1.442695
    %v100 = vpow.pop %v99
    %v101 = vmul.f32 %v92, 1.442695
    %v102 = vpow.pop %v101
    %v103 = vmul.f32 %v93, 1.442695
    %v104 = vpow.pop %v103
    %v105 = vmul.f32 %v94, 1.442695
    %v106 = vpow.pop %v105
    %v107 = vmul.f32 %v95, 1.442695
    %v108 = vpow.pop %v107
    %v109 = vmul.f32 %v96, 1.442695
    %v110 = vpow.pop %v109
    %v111 = vadd.f32 %v98, 1.0
    %v112 = vadd.f32 %v100, 1.0
    %v113 = vadd.f32 %v102, 1.0
    %v114 = vadd.f32 %v104, 1.0
    %v115 = vadd.f32 %v106, 1.0
    %v116 = vadd.f32 %v108, 1.0
    %v117 = vadd.f32 %v110, 1.0
    %v118 = vlog2.pop %v111
    %v119 = vmul.f32 %v118, 0.6931472
    %v120 = vlog2.pop %v112
    %v121 = vmul.f32 %v120, 0.6931472
    %v122 = vlog2.pop %v113
    %v123 = vmul.f32 %v122, 0.6931472
    %v124 = vlog2.pop %v114
    %v125 = vmul.f32 %v124, 0.6931472
    %v126 = vlog2.pop %v115
    %v127 = vmul.f32 %v126, 0.6931472
    %v128 = vlog2.pop %v116
    %v129 = vmul.f32 %v128, 0.6931472
    %v130 = vlog2.pop %v117
    %v131 = vmul.f32 %v130, 0.6931472
    %v132 = vadd.f32 %v76, %v119
    %v133 = vadd.f32 %v77, %v121
    %v134 = vadd.f32 %v78, %v123
    %v135 = vadd.f32 %v79, %v125
    %v136 = vadd.f32 %v80, %v127
    %v137 = vadd.f32 %v81, %v129
    %v138 = vadd.f32 %v82, %v131
    %v139 = vmul.f32 %v55, %v132
    %v140 = vmul.f32 %v56, %v133
    %v141 = vmul.f32 %v57, %v134
    %v142 = vmul.f32 %v58, %v135
    %v143 = vmul.f32 %v59, %v136
    %v144 = vmul.f32 %v60, %v137
    %v145 = vmul.f32 %v61, %v138
    %vm146 = vcmask 408576
    %v147 = vsel %vm146, %v139, 0.0
    %v148 = vsel %vm146, %v140, 0.0
    %v149 = vadd.f32 %v147, %v148
    %v150 = vsel %vm146, %v141, 0.0
    %v151 = vadd.f32 %v149, %v150
    %v152 = vsel %vm146, %v142, 0.0
    %v153 = vadd.f32 %v151, %v152
    %v154 = vsel %vm146, %v143, 0.0
    %v155 = vadd.f32 %v153, %v154
    %v156 = vsel %vm146, %v144, 0.0
    %v157 = vadd.f32 %v155, %v156
    %vm158 = vcmask 402432
    %v159 = vsel %vm158, %v145, 0.0
    %v160 = vadd.f32 %v157, %v159
    %161 = vadd.xlane.f32.xlu0 %v160
    %v162 = vpop.xlane.xlu0 %161
    %v163 = vrot.slane %v162, 4
    %v164 = vadd.f32 %v162, %v163
    %v165 = vrot.slane %v164, 2
    %v166 = vadd.f32 %v164, %v165
    %v167 = vrot.slane %v166, 1
    %v168 = vadd.f32 %v166, %v167
    %s169 = vtos %v168
    %v170 = vrcp.pop 2500.0
    %s171 = vtos %v170
    %s172 = smul.f32 %s169, %s171
    %v173 = vld [vmem:[%s2] sm:$0xfe]
    %v174 = vld [vmem:[%s2 + $0x8] sm:$0xfe]
    %v175 = vld [vmem:[%s2 + $0x10] sm:$0xfe]
    %v176 = vld [vmem:[%s2 + $0x18] sm:$0xfe]
    %v177 = vld [vmem:[%s2 + $0x20] sm:$0xfe]
    %v178 = vld [vmem:[%s2 + $0x28] sm:$0xfe]
    %v179 = vld [vmem:[%s2 + $0x30] sm:$0xfe]
    %v180 = vld [vmem:[%s2 + $0x38] sm:$0xfe]
    %v181 = vld [vmem:[%s2 + $0x40] sm:$0xfe]
    %v182 = vld [vmem:[%s2 + $0x48] sm:$0xfe]
    %v183 = vld [vmem:[%s2 + $0x50] sm:$0xfe]
    %v184 = vld [vmem:[%s2 + $0x58] sm:$0xfe]
    %v185 = vld [vmem:[%s2 + $0x60] sm:$0xfe]
    %v186 = vld [vmem:[%s2 + $0x68] sm:$0xfe]
    %v187 = vld [vmem:[%s2 + $0x70] sm:$0xfe]
    %v188 = vld [vmem:[%s2 + $0x78] sm:$0xfe]
    %v189 = vld [vmem:[%s2 + $0x80] sm:$0xfe]
    %v190 = vld [vmem:[%s2 + $0x88] sm:$0xfe]
    %v191 = vld [vmem:[%s2 + $0x90] sm:$0xfe]
    %v192 = vld [vmem:[%s2 + $0x98] sm:$0xfe]
    %v193 = vld [vmem:[%s3] sm:$0xfe]
    %v194 = vld [vmem:[%s3 + $0x8] sm:$0xfe]
    %v195 = vld [vmem:[%s3 + $0x10] sm:$0xfe]
    %v196 = vld [vmem:[%s3 + $0x18] sm:$0xfe]
    %v197 = vld [vmem:[%s3 + $0x20] sm:$0xfe]
    %v198 = vld [vmem:[%s3 + $0x28] sm:$0xfe]
    %v199 = vld [vmem:[%s3 + $0x30] sm:$0xfe]
    %v200 = vld [vmem:[%s3 + $0x38] sm:$0xfe]
    %v201 = vld [vmem:[%s3 + $0x40] sm:$0xfe]
    %v202 = vld [vmem:[%s3 + $0x48] sm:$0xfe]
    %v203 = vld [vmem:[%s3 + $0x50] sm:$0xfe]
    %v204 = vld [vmem:[%s3 + $0x58] sm:$0xfe]
    %v205 = vld [vmem:[%s3 + $0x60] sm:$0xfe]
    %v206 = vld [vmem:[%s3 + $0x68] sm:$0xfe]
    %v207 = vld [vmem:[%s3 + $0x70] sm:$0xfe]
    %v208 = vld [vmem:[%s3 + $0x78] sm:$0xfe]
    %v209 = vld [vmem:[%s3 + $0x80] sm:$0xfe]
    %v210 = vld [vmem:[%s3 + $0x88] sm:$0xfe]
    %v211 = vld [vmem:[%s3 + $0x90] sm:$0xfe]
    %v212 = vld [vmem:[%s3 + $0x98] sm:$0xfe]
    %vm213 = vcmask 1047553
    %v214 = vsel %vm213, %v173, -inf
    %v215 = vsel %vm213, %v174, -inf
    %v216 = vsel %vm213, %v175, -inf
    %v217 = vsel %vm213, %v176, -inf
    %v218 = vsel %vm213, %v177, -inf
    %v219 = vmax.f32 %v214, %v218
    %v220 = vsel %vm213, %v178, -inf
    %v221 = vmax.f32 %v215, %v220
    %v222 = vsel %vm213, %v179, -inf
    %v223 = vmax.f32 %v216, %v222
    %v224 = vsel %vm213, %v180, -inf
    %v225 = vmax.f32 %v217, %v224
    %v226 = vsel %vm213, %v181, -inf
    %v227 = vmax.f32 %v219, %v226
    %v228 = vsel %vm213, %v182, -inf
    %v229 = vmax.f32 %v221, %v228
    %v230 = vsel %vm213, %v183, -inf
    %v231 = vmax.f32 %v223, %v230
    %v232 = vsel %vm213, %v184, -inf
    %v233 = vmax.f32 %v225, %v232
    %v234 = vsel %vm213, %v185, -inf
    %v235 = vmax.f32 %v227, %v234
    %v236 = vsel %vm213, %v186, -inf
    %v237 = vmax.f32 %v229, %v236
    %v238 = vsel %vm213, %v187, -inf
    %v239 = vmax.f32 %v231, %v238
    %v240 = vsel %vm213, %v188, -inf
    %v241 = vmax.f32 %v233, %v240
    %v242 = vsel %vm213, %v189, -inf
    %v243 = vmax.f32 %v235, %v242
    %v244 = vsel %vm213, %v190, -inf
    %v245 = vmax.f32 %v237, %v244
    %v246 = vsel %vm213, %v191, -inf
    %v247 = vmax.f32 %v239, %v246
    %vm248 = vcmask 564225
    %v249 = vsel %vm248, %v192, -inf
    %v250 = vmax.f32 %v241, %v249
    %v251 = vmax.f32 %v243, %v245
    %v252 = vmax.f32 %v247, %v250
    %v253 = vmax.f32 %v251, %v252
    %254 = vmax.xlane.f32.xlu0 %v253
    %v255 = vpop.xlane.xlu0 %254
    %v256 = vsub.f32 %v173, %v255
    %v257 = vsub.f32 %v174, %v255
    %v258 = vsub.f32 %v175, %v255
    %v259 = vsub.f32 %v176, %v255
    %v260 = vsub.f32 %v177, %v255
    %v261 = vsub.f32 %v178, %v255
    %v262 = vsub.f32 %v179, %v255
    %v263 = vsub.f32 %v180, %v255
    %v264 = vsub.f32 %v181, %v255
    %v265 = vsub.f32 %v182, %v255
    %v266 = vsub.f32 %v183, %v255
    %v267 = vsub.f32 %v184, %v255
    %v268 = vsub.f32 %v185, %v255
    %v269 = vsub.f32 %v186, %v255
    %v270 = vsub.f32 %v187, %v255
    %v271 = vsub.f32 %v188, %v255
    %v272 = vsub.f32 %v189, %v255
    %v273 = vsub.f32 %v190, %v255
    %v274 = vsub.f32 %v191, %v255
    %v275 = vsub.f32 %v192, %v255
    %v276 = vmul.f32 %v256, 1.442695
    %v277 = vpow.pop %v276
    %v278 = vmul.f32 %v257, 1.442695
    %v279 = vpow.pop %v278
    %v280 = vmul.f32 %v258, 1.442695
    %v281 = vpow.pop %v280
    %v282 = vmul.f32 %v259, 1.442695
    %v283 = vpow.pop %v282
    %v284 = vmul.f32 %v260, 1.442695
    %v285 = vpow.pop %v284
    %v286 = vmul.f32 %v261, 1.442695
    %v287 = vpow.pop %v286
    %v288 = vmul.f32 %v262, 1.442695
    %v289 = vpow.pop %v288
    %v290 = vmul.f32 %v263, 1.442695
    %v291 = vpow.pop %v290
    %v292 = vmul.f32 %v264, 1.442695
    %v293 = vpow.pop %v292
    %v294 = vmul.f32 %v265, 1.442695
    %v295 = vpow.pop %v294
    %v296 = vmul.f32 %v266, 1.442695
    %v297 = vpow.pop %v296
    %v298 = vmul.f32 %v267, 1.442695
    %v299 = vpow.pop %v298
    %v300 = vmul.f32 %v268, 1.442695
    %v301 = vpow.pop %v300
    %v302 = vmul.f32 %v269, 1.442695
    %v303 = vpow.pop %v302
    %v304 = vmul.f32 %v270, 1.442695
    %v305 = vpow.pop %v304
    %v306 = vmul.f32 %v271, 1.442695
    %v307 = vpow.pop %v306
    %v308 = vmul.f32 %v272, 1.442695
    %v309 = vpow.pop %v308
    %v310 = vmul.f32 %v273, 1.442695
    %v311 = vpow.pop %v310
    %v312 = vmul.f32 %v274, 1.442695
    %v313 = vpow.pop %v312
    %v314 = vmul.f32 %v275, 1.442695
    %v315 = vpow.pop %v314
    %v316 = vsel %vm213, %v277, 0.0
    %v317 = vsel %vm213, %v279, 0.0
    %v318 = vadd.f32 %v316, %v317
    %v319 = vsel %vm213, %v281, 0.0
    %v320 = vadd.f32 %v318, %v319
    %v321 = vsel %vm213, %v283, 0.0
    %v322 = vadd.f32 %v320, %v321
    %v323 = vsel %vm213, %v285, 0.0
    %v324 = vadd.f32 %v322, %v323
    %v325 = vsel %vm213, %v287, 0.0
    %v326 = vadd.f32 %v324, %v325
    %v327 = vsel %vm213, %v289, 0.0
    %v328 = vadd.f32 %v326, %v327
    %v329 = vsel %vm213, %v291, 0.0
    %v330 = vadd.f32 %v328, %v329
    %v331 = vsel %vm213, %v293, 0.0
    %v332 = vadd.f32 %v330, %v331
    %v333 = vsel %vm213, %v295, 0.0
    %v334 = vadd.f32 %v332, %v333
    %v335 = vsel %vm213, %v297, 0.0
    %v336 = vadd.f32 %v334, %v335
    %v337 = vsel %vm213, %v299, 0.0
    %v338 = vadd.f32 %v336, %v337
    %v339 = vsel %vm213, %v301, 0.0
    %v340 = vadd.f32 %v338, %v339
    %v341 = vsel %vm213, %v303, 0.0
    %v342 = vadd.f32 %v340, %v341
    %v343 = vsel %vm213, %v305, 0.0
    %v344 = vadd.f32 %v342, %v343
    %v345 = vsel %vm213, %v307, 0.0
    %v346 = vadd.f32 %v344, %v345
    %v347 = vsel %vm213, %v309, 0.0
    %v348 = vadd.f32 %v346, %v347
    %v349 = vsel %vm213, %v311, 0.0
    %v350 = vadd.f32 %v348, %v349
    %v351 = vsel %vm213, %v313, 0.0
    %v352 = vadd.f32 %v350, %v351
    %v353 = vsel %vm248, %v315, 0.0
    %v354 = vadd.f32 %v352, %v353
    %355 = vadd.xlane.f32.xlu0 %v354
    %v356 = vpop.xlane.xlu0 %355
    %v357 = vlog2.pop %v356
    %v358 = vmul.f32 %v357, 0.6931472
    %v359 = vadd.f32 %v255, %v358
    %v360 = vsel %vm213, %v193, 0.0
    %v361 = vsel %vm213, %v194, 0.0
    %v362 = vadd.f32 %v360, %v361
    %v363 = vsel %vm213, %v195, 0.0
    %v364 = vadd.f32 %v362, %v363
    %v365 = vsel %vm213, %v196, 0.0
    %v366 = vadd.f32 %v364, %v365
    %v367 = vsel %vm213, %v197, 0.0
    %v368 = vadd.f32 %v366, %v367
    %v369 = vsel %vm213, %v198, 0.0
    %v370 = vadd.f32 %v368, %v369
    %v371 = vsel %vm213, %v199, 0.0
    %v372 = vadd.f32 %v370, %v371
    %v373 = vsel %vm213, %v200, 0.0
    %v374 = vadd.f32 %v372, %v373
    %v375 = vsel %vm213, %v201, 0.0
    %v376 = vadd.f32 %v374, %v375
    %v377 = vsel %vm213, %v202, 0.0
    %v378 = vadd.f32 %v376, %v377
    %v379 = vsel %vm213, %v203, 0.0
    %v380 = vadd.f32 %v378, %v379
    %v381 = vsel %vm213, %v204, 0.0
    %v382 = vadd.f32 %v380, %v381
    %v383 = vsel %vm213, %v205, 0.0
    %v384 = vadd.f32 %v382, %v383
    %v385 = vsel %vm213, %v206, 0.0
    %v386 = vadd.f32 %v384, %v385
    %v387 = vsel %vm213, %v207, 0.0
    %v388 = vadd.f32 %v386, %v387
    %v389 = vsel %vm213, %v208, 0.0
    %v390 = vadd.f32 %v388, %v389
    %v391 = vsel %vm213, %v209, 0.0
    %v392 = vadd.f32 %v390, %v391
    %v393 = vsel %vm213, %v210, 0.0
    %v394 = vadd.f32 %v392, %v393
    %v395 = vsel %vm213, %v211, 0.0
    %v396 = vadd.f32 %v394, %v395
    %v397 = vsel %vm248, %v212, 0.0
    %v398 = vadd.f32 %v396, %v397
    %399 = vadd.xlane.f32.xlu0 %v398
    %v400 = vpop.xlane.xlu0 %399
    %v401 = vmul.f32 %v193, %v173
    %v402 = vmul.f32 %v194, %v174
    %v403 = vmul.f32 %v195, %v175
    %v404 = vmul.f32 %v196, %v176
    %v405 = vmul.f32 %v197, %v177
    %v406 = vmul.f32 %v198, %v178
    %v407 = vmul.f32 %v199, %v179
    %v408 = vmul.f32 %v200, %v180
    %v409 = vmul.f32 %v201, %v181
    %v410 = vmul.f32 %v202, %v182
    %v411 = vmul.f32 %v203, %v183
    %v412 = vmul.f32 %v204, %v184
    %v413 = vmul.f32 %v205, %v185
    %v414 = vmul.f32 %v206, %v186
    %v415 = vmul.f32 %v207, %v187
    %v416 = vmul.f32 %v208, %v188
    %v417 = vmul.f32 %v209, %v189
    %v418 = vmul.f32 %v210, %v190
    %v419 = vmul.f32 %v211, %v191
    %v420 = vmul.f32 %v212, %v192
    %v421 = vsel %vm213, %v401, 0.0
    %v422 = vsel %vm213, %v402, 0.0
    %v423 = vadd.f32 %v421, %v422
    %v424 = vsel %vm213, %v403, 0.0
    %v425 = vadd.f32 %v423, %v424
    %v426 = vsel %vm213, %v404, 0.0
    %v427 = vadd.f32 %v425, %v426
    %v428 = vsel %vm213, %v405, 0.0
    %v429 = vadd.f32 %v427, %v428
    %v430 = vsel %vm213, %v406, 0.0
    %v431 = vadd.f32 %v429, %v430
    %v432 = vsel %vm213, %v407, 0.0
    %v433 = vadd.f32 %v431, %v432
    %v434 = vsel %vm213, %v408, 0.0
    %v435 = vadd.f32 %v433, %v434
    %v436 = vsel %vm213, %v409, 0.0
    %v437 = vadd.f32 %v435, %v436
    %v438 = vsel %vm213, %v410, 0.0
    %v439 = vadd.f32 %v437, %v438
    %v440 = vsel %vm213, %v411, 0.0
    %v441 = vadd.f32 %v439, %v440
    %v442 = vsel %vm213, %v412, 0.0
    %v443 = vadd.f32 %v441, %v442
    %v444 = vsel %vm213, %v413, 0.0
    %v445 = vadd.f32 %v443, %v444
    %v446 = vsel %vm213, %v414, 0.0
    %v447 = vadd.f32 %v445, %v446
    %v448 = vsel %vm213, %v415, 0.0
    %v449 = vadd.f32 %v447, %v448
    %v450 = vsel %vm213, %v416, 0.0
    %v451 = vadd.f32 %v449, %v450
    %v452 = vsel %vm213, %v417, 0.0
    %v453 = vadd.f32 %v451, %v452
    %v454 = vsel %vm213, %v418, 0.0
    %v455 = vadd.f32 %v453, %v454
    %v456 = vsel %vm213, %v419, 0.0
    %v457 = vadd.f32 %v455, %v456
    %v458 = vsel %vm248, %v420, 0.0
    %v459 = vadd.f32 %v457, %v458
    %460 = vadd.xlane.f32.xlu0 %v459
    %v461 = vpop.xlane.xlu0 %460
    %v462 = vmul.f32 %v359, %v400
    %v463 = vsub.f32 %v462, %v461
    %v464 = vmul.f32 %v463, 0.00039984006
    %v466 = vrot.slane %v464, 1
    %vm468 = vcmask 6144
    %v469 = vsel %vm468, %v466, 0.0
    %470 = vadd.xlane.f32.xlu0 %v469
    %v471 = vpop.xlane.xlu0 %470
    %v472 = vrot.slane %v471, 4
    %v473 = vadd.f32 %v471, %v472
    %v474 = vrot.slane %v473, 2
    %v475 = vadd.f32 %v473, %v474
    %v476 = vrot.slane %v475, 1
    %v477 = vadd.f32 %v475, %v476
    %s478 = vtos %v477
    %v479 = vrcp.pop 7.0
    %s480 = vtos %v479
    %s481 = smul.f32 %s478, %s480
    %v482 = vld [vmem:[%s4] sm:$0xff]
    %v483 = vld [vmem:[%s4 + $0x8] sm:$0xff]
    %v484 = vld [vmem:[%s4 + $0x10] sm:$0xff]
    %v485 = vld [vmem:[%s4 + $0x18] sm:$0xff]
    %v486 = vld [vmem:[%s4 + $0x20] sm:$0xff]
    %v487 = vld [vmem:[%s4 + $0x28] sm:$0xff]
    %v488 = vld [vmem:[%s4 + $0x30] sm:$0xff]
    %v489 = vld [vmem:[%s4 + $0x38] sm:$0xff]
    %v490 = vld [vmem:[%s4 + $0x40] sm:$0xff]
    %v491 = vld [vmem:[%s4 + $0x48] sm:$0xff]
    %v492 = vld [vmem:[%s4 + $0x50] sm:$0xff]
    %v493 = vld [vmem:[%s4 + $0x58] sm:$0xff]
    %v494 = vld [vmem:[%s4 + $0x60] sm:$0xf]
    %v495 = vld [vmem:[%s5] sm:$0xff]
    %v496 = vld [vmem:[%s5 + $0x8] sm:$0xff]
    %v497 = vld [vmem:[%s5 + $0x10] sm:$0xff]
    %v498 = vld [vmem:[%s5 + $0x18] sm:$0xff]
    %v499 = vld [vmem:[%s5 + $0x20] sm:$0xff]
    %v500 = vld [vmem:[%s5 + $0x28] sm:$0xff]
    %v501 = vld [vmem:[%s5 + $0x30] sm:$0xff]
    %v502 = vld [vmem:[%s5 + $0x38] sm:$0xff]
    %v503 = vld [vmem:[%s5 + $0x40] sm:$0xff]
    %v504 = vld [vmem:[%s5 + $0x48] sm:$0xff]
    %v505 = vld [vmem:[%s5 + $0x50] sm:$0xff]
    %v506 = vld [vmem:[%s5 + $0x58] sm:$0xff]
    %v507 = vld [vmem:[%s5 + $0x60] sm:$0xf]
    %v508 = vld [vmem:[%s5 + $0x68] sm:$0xff]
    %v509 = vld [vmem:[%s5 + $0x70] sm:$0xff]
    %v510 = vld [vmem:[%s5 + $0x78] sm:$0xff]
    %v511 = vld [vmem:[%s5 + $0x80] sm:$0xff]
    %v512 = vld [vmem:[%s5 + $0x88] sm:$0xff]
    %v513 = vld [vmem:[%s5 + $0x90] sm:$0xff]
    %v514 = vld [vmem:[%s5 + $0x98] sm:$0xff]
    %v515 = vld [vmem:[%s5 + $0xa0] sm:$0xff]
    %v516 = vld [vmem:[%s5 + $0xa8] sm:$0xff]
    %v517 = vld [vmem:[%s5 + $0xb0] sm:$0xff]
    %v518 = vld [vmem:[%s5 + $0xb8] sm:$0xff]
    %v519 = vld [vmem:[%s5 + $0xc0] sm:$0xff]
    %v520 = vld [vmem:[%s5 + $0xc8] sm:$0xf]
    %v521 = vld [vmem:[%s5 + $0xd0] sm:$0xff]
    %v522 = vld [vmem:[%s5 + $0xd8] sm:$0xff]
    %v523 = vld [vmem:[%s5 + $0xe0] sm:$0xff]
    %v524 = vld [vmem:[%s5 + $0xe8] sm:$0xff]
    %v525 = vld [vmem:[%s5 + $0xf0] sm:$0xff]
    %v526 = vld [vmem:[%s5 + $0xf8] sm:$0xff]
    %v527 = vld [vmem:[%s5 + $0x100] sm:$0xff]
    %v528 = vld [vmem:[%s5 + $0x108] sm:$0xff]
    %v529 = vld [vmem:[%s5 + $0x110] sm:$0xff]
    %v530 = vld [vmem:[%s5 + $0x118] sm:$0xff]
    %v531 = vld [vmem:[%s5 + $0x120] sm:$0xff]
    %v532 = vld [vmem:[%s5 + $0x128] sm:$0xff]
    %v533 = vld [vmem:[%s5 + $0x130] sm:$0xf]
    %v534 = vld [vmem:[%s5 + $0x138] sm:$0xff]
    %v535 = vld [vmem:[%s5 + $0x140] sm:$0xff]
    %v536 = vld [vmem:[%s5 + $0x148] sm:$0xff]
    %v537 = vld [vmem:[%s5 + $0x150] sm:$0xff]
    %v538 = vld [vmem:[%s5 + $0x158] sm:$0xff]
    %v539 = vld [vmem:[%s5 + $0x160] sm:$0xff]
    %v540 = vld [vmem:[%s5 + $0x168] sm:$0xff]
    %v541 = vld [vmem:[%s5 + $0x170] sm:$0xff]
    %v542 = vld [vmem:[%s5 + $0x178] sm:$0xff]
    %v543 = vld [vmem:[%s5 + $0x180] sm:$0xff]
    %v544 = vld [vmem:[%s5 + $0x188] sm:$0xff]
    %v545 = vld [vmem:[%s5 + $0x190] sm:$0xff]
    %v546 = vld [vmem:[%s5 + $0x198] sm:$0xf]
    %vm547 = vcmask 818176
    %v548 = vsel %vm547, %v495, 0.0
    %v549 = vsel %vm547, %v508, 0.0
    %v550 = vadd.f32 %v548, %v549
    %v551 = vsel %vm547, %v521, 0.0
    %v552 = vadd.f32 %v550, %v551
    %v553 = vsel %vm547, %v534, 0.0
    %v554 = vadd.f32 %v552, %v553
    %v555 = vsel %vm547, %v496, 0.0
    %v556 = vsel %vm547, %v509, 0.0
    %v557 = vadd.f32 %v555, %v556
    %v558 = vsel %vm547, %v522, 0.0
    %v559 = vadd.f32 %v557, %v558
    %v560 = vsel %vm547, %v535, 0.0
    %v561 = vadd.f32 %v559, %v560
    %v562 = vsel %vm547, %v497, 0.0
    %v563 = vsel %vm547, %v510, 0.0
    %v564 = vadd.f32 %v562, %v563
    %v565 = vsel %vm547, %v523, 0.0
    %v566 = vadd.f32 %v564, %v565
    %v567 = vsel %vm547, %v536, 0.0
    %v568 = vadd.f32 %v566, %v567
    %v569 = vsel %vm547, %v498, 0.0
    %v570 = vsel %vm547, %v511, 0.0
    %v571 = vadd.f32 %v569, %v570
    %v572 = vsel %vm547, %v524, 0.0
    %v573 = vadd.f32 %v571, %v572
    %v574 = vsel %vm547, %v537, 0.0
    %v575 = vadd.f32 %v573, %v574
    %v576 = vsel %vm547, %v499, 0.0
    %v577 = vsel %vm547, %v512, 0.0
    %v578 = vadd.f32 %v576, %v577
    %v579 = vsel %vm547, %v525, 0.0
    %v580 = vadd.f32 %v578, %v579
    %v581 = vsel %vm547, %v538, 0.0
    %v582 = vadd.f32 %v580, %v581
    %v583 = vsel %vm547, %v500, 0.0
    %v584 = vsel %vm547, %v513, 0.0
    %v585 = vadd.f32 %v583, %v584
    %v586 = vsel %vm547, %v526, 0.0
    %v587 = vadd.f32 %v585, %v586
    %v588 = vsel %vm547, %v539, 0.0
    %v589 = vadd.f32 %v587, %v588
    %v590 = vsel %vm547, %v501, 0.0
    %v591 = vsel %vm547, %v514, 0.0
    %v592 = vadd.f32 %v590, %v591
    %v593 = vsel %vm547, %v527, 0.0
    %v594 = vadd.f32 %v592, %v593
    %v595 = vsel %vm547, %v540, 0.0
    %v596 = vadd.f32 %v594, %v595
    %v597 = vsel %vm547, %v502, 0.0
    %v598 = vsel %vm547, %v515, 0.0
    %v599 = vadd.f32 %v597, %v598
    %v600 = vsel %vm547, %v528, 0.0
    %v601 = vadd.f32 %v599, %v600
    %v602 = vsel %vm547, %v541, 0.0
    %v603 = vadd.f32 %v601, %v602
    %v604 = vsel %vm547, %v503, 0.0
    %v605 = vsel %vm547, %v516, 0.0
    %v606 = vadd.f32 %v604, %v605
    %v607 = vsel %vm547, %v529, 0.0
    %v608 = vadd.f32 %v606, %v607
    %v609 = vsel %vm547, %v542, 0.0
    %v610 = vadd.f32 %v608, %v609
    %v611 = vsel %vm547, %v504, 0.0
    %v612 = vsel %vm547, %v517, 0.0
    %v613 = vadd.f32 %v611, %v612
    %v614 = vsel %vm547, %v530, 0.0
    %v615 = vadd.f32 %v613, %v614
    %v616 = vsel %vm547, %v543, 0.0
    %v617 = vadd.f32 %v615, %v616
    %v618 = vsel %vm547, %v505, 0.0
    %v619 = vsel %vm547, %v518, 0.0
    %v620 = vadd.f32 %v618, %v619
    %v621 = vsel %vm547, %v531, 0.0
    %v622 = vadd.f32 %v620, %v621
    %v623 = vsel %vm547, %v544, 0.0
    %v624 = vadd.f32 %v622, %v623
    %v625 = vsel %vm547, %v506, 0.0
    %v626 = vsel %vm547, %v519, 0.0
    %v627 = vadd.f32 %v625, %v626
    %v628 = vsel %vm547, %v532, 0.0
    %v629 = vadd.f32 %v627, %v628
    %v630 = vsel %vm547, %v545, 0.0
    %v631 = vadd.f32 %v629, %v630
    %vm632 = vcmask 814080
    %v633 = vsel %vm632, %v507, 0.0
    %v634 = vsel %vm632, %v520, 0.0
    %v635 = vadd.f32 %v633, %v634
    %v636 = vsel %vm632, %v533, 0.0
    %v637 = vadd.f32 %v635, %v636
    %v638 = vsel %vm632, %v546, 0.0
    %v639 = vadd.f32 %v637, %v638
    %v640 = vmax.f32 %v554, 0.0
    %v641 = vmax.f32 %v561, 0.0
    %v642 = vmax.f32 %v568, 0.0
    %v643 = vmax.f32 %v575, 0.0
    %v644 = vmax.f32 %v582, 0.0
    %v645 = vmax.f32 %v589, 0.0
    %v646 = vmax.f32 %v596, 0.0
    %v647 = vmax.f32 %v603, 0.0
    %v648 = vmax.f32 %v610, 0.0
    %v649 = vmax.f32 %v617, 0.0
    %v650 = vmax.f32 %v624, 0.0
    %v651 = vmax.f32 %v631, 0.0
    %v652 = vmax.f32 %v639, 0.0
    %v653 = vmin.f32 %v640, 1.0
    %v654 = vmin.f32 %v641, 1.0
    %v655 = vmin.f32 %v642, 1.0
    %v656 = vmin.f32 %v643, 1.0
    %v657 = vmin.f32 %v644, 1.0
    %v658 = vmin.f32 %v645, 1.0
    %v659 = vmin.f32 %v646, 1.0
    %v660 = vmin.f32 %v647, 1.0
    %v661 = vmin.f32 %v648, 1.0
    %v662 = vmin.f32 %v649, 1.0
    %v663 = vmin.f32 %v650, 1.0
    %v664 = vmin.f32 %v651, 1.0
    %v665 = vmin.f32 %v652, 1.0
    %vm666 = vcmp.gt.f32.partialorder %v653, 0.5
    %vm667 = vcmp.gt.f32.partialorder %v654, 0.5
    %vm668 = vcmp.gt.f32.partialorder %v655, 0.5
    %vm669 = vcmp.gt.f32.partialorder %v656, 0.5
    %vm670 = vcmp.gt.f32.partialorder %v657, 0.5
    %vm671 = vcmp.gt.f32.partialorder %v658, 0.5
    %vm672 = vcmp.gt.f32.partialorder %v659, 0.5
    %vm673 = vcmp.gt.f32.partialorder %v660, 0.5
    %vm674 = vcmp.gt.f32.partialorder %v661, 0.5
    %vm675 = vcmp.gt.f32.partialorder %v662, 0.5
    %vm676 = vcmp.gt.f32.partialorder %v663, 0.5
    %vm677 = vcmp.gt.f32.partialorder %v664, 0.5
    %vm678 = vcmp.gt.f32.partialorder %v665, 0.5
    %v679 = vsel %vm666, 1, 0
    %v680 = vsel %vm667, 1, 0
    %v681 = vsel %vm668, 1, 0
    %v682 = vsel %vm669, 1, 0
    %v683 = vsel %vm670, 1, 0
    %v684 = vsel %vm671, 1, 0
    %v685 = vsel %vm672, 1, 0
    %v686 = vsel %vm673, 1, 0
    %v687 = vsel %vm674, 1, 0
    %v688 = vsel %vm675, 1, 0
    %v689 = vsel %vm676, 1, 0
    %v690 = vsel %vm677, 1, 0
    %v691 = vsel %vm678, 1, 0
    %v692 = vcvt.s32.f32 %v679
    %v693 = vcvt.s32.f32 %v680
    %v694 = vcvt.s32.f32 %v681
    %v695 = vcvt.s32.f32 %v682
    %v696 = vcvt.s32.f32 %v683
    %v697 = vcvt.s32.f32 %v684
    %v698 = vcvt.s32.f32 %v685
    %v699 = vcvt.s32.f32 %v686
    %v700 = vcvt.s32.f32 %v687
    %v701 = vcvt.s32.f32 %v688
    %v702 = vcvt.s32.f32 %v689
    %v703 = vcvt.s32.f32 %v690
    %v704 = vcvt.s32.f32 %v691
    %v705 = vand.u32 2147483647, %v482
    %v706 = vand.u32 2147483647, %v483
    %v707 = vand.u32 2147483647, %v484
    %v708 = vand.u32 2147483647, %v485
    %v709 = vand.u32 2147483647, %v486
    %v710 = vand.u32 2147483647, %v487
    %v711 = vand.u32 2147483647, %v488
    %v712 = vand.u32 2147483647, %v489
    %v713 = vand.u32 2147483647, %v490
    %v714 = vand.u32 2147483647, %v491
    %v715 = vand.u32 2147483647, %v492
    %v716 = vand.u32 2147483647, %v493
    %v717 = vand.u32 2147483647, %v494
    %v718 = vsub.f32 0.0, %v705
    %v719 = vsub.f32 0.0, %v706
    %v720 = vsub.f32 0.0, %v707
    %v721 = vsub.f32 0.0, %v708
    %v722 = vsub.f32 0.0, %v709
    %v723 = vsub.f32 0.0, %v710
    %v724 = vsub.f32 0.0, %v711
    %v725 = vsub.f32 0.0, %v712
    %v726 = vsub.f32 0.0, %v713
    %v727 = vsub.f32 0.0, %v714
    %v728 = vsub.f32 0.0, %v715
    %v729 = vsub.f32 0.0, %v716
    %v730 = vsub.f32 0.0, %v717
    %v731 = vmul.f32 %v718, 1.442695
    %v732 = vpow.pop %v731
    %v733 = vmul.f32 %v719, 1.442695
    %v734 = vpow.pop %v733
    %v735 = vmul.f32 %v720, 1.442695
    %v736 = vpow.pop %v735
    %v737 = vmul.f32 %v721, 1.442695
    %v738 = vpow.pop %v737
    %v739 = vmul.f32 %v722, 1.442695
    %v740 = vpow.pop %v739
    %v741 = vmul.f32 %v723, 1.442695
    %v742 = vpow.pop %v741
    %v743 = vmul.f32 %v724, 1.442695
    %v744 = vpow.pop %v743
    %v745 = vmul.f32 %v725, 1.442695
    %v746 = vpow.pop %v745
    %v747 = vmul.f32 %v726, 1.442695
    %v748 = vpow.pop %v747
    %v749 = vmul.f32 %v727, 1.442695
    %v750 = vpow.pop %v749
    %v751 = vmul.f32 %v728, 1.442695
    %v752 = vpow.pop %v751
    %v753 = vmul.f32 %v729, 1.442695
    %v754 = vpow.pop %v753
    %v755 = vmul.f32 %v730, 1.442695
    %v756 = vpow.pop %v755
    %v757 = vadd.f32 %v732, 1.0
    %v758 = vadd.f32 %v734, 1.0
    %v759 = vadd.f32 %v736, 1.0
    %v760 = vadd.f32 %v738, 1.0
    %v761 = vadd.f32 %v740, 1.0
    %v762 = vadd.f32 %v742, 1.0
    %v763 = vadd.f32 %v744, 1.0
    %v764 = vadd.f32 %v746, 1.0
    %v765 = vadd.f32 %v748, 1.0
    %v766 = vadd.f32 %v750, 1.0
    %v767 = vadd.f32 %v752, 1.0
    %v768 = vadd.f32 %v754, 1.0
    %v769 = vadd.f32 %v756, 1.0
    %v770 = vmax.f32 %v482, 0.0
    %v771 = vmax.f32 %v483, 0.0
    %v772 = vmax.f32 %v484, 0.0
    %v773 = vmax.f32 %v485, 0.0
    %v774 = vmax.f32 %v486, 0.0
    %v775 = vmax.f32 %v487, 0.0
    %v776 = vmax.f32 %v488, 0.0
    %v777 = vmax.f32 %v489, 0.0
    %v778 = vmax.f32 %v490, 0.0
    %v779 = vmax.f32 %v491, 0.0
    %v780 = vmax.f32 %v492, 0.0
    %v781 = vmax.f32 %v493, 0.0
    %v782 = vmax.f32 %v494, 0.0
    %v783 = vmul.f32 %v482, %v692
    %v784 = vmul.f32 %v483, %v693
    %v785 = vmul.f32 %v484, %v694
    %v786 = vmul.f32 %v485, %v695
    %v787 = vmul.f32 %v486, %v696
    %v788 = vmul.f32 %v487, %v697
    %v789 = vmul.f32 %v488, %v698
    %v790 = vmul.f32 %v489, %v699
    %v791 = vmul.f32 %v490, %v700
    %v792 = vmul.f32 %v491, %v701
    %v793 = vmul.f32 %v492, %v702
    %v794 = vmul.f32 %v493, %v703
    %v795 = vmul.f32 %v494, %v704
    %v796 = vsub.f32 %v770, %v783
    %v797 = vsub.f32 %v771, %v784
    %v798 = vsub.f32 %v772, %v785
    %v799 = vsub.f32 %v773, %v786
    %v800 = vsub.f32 %v774, %v787
    %v801 = vsub.f32 %v775, %v788
    %v802 = vsub.f32 %v776, %v789
    %v803 = vsub.f32 %v777, %v790
    %v804 = vsub.f32 %v778, %v791
    %v805 = vsub.f32 %v779, %v792
    %v806 = vsub.f32 %v780, %v793
    %v807 = vsub.f32 %v781, %v794
    %v808 = vsub.f32 %v782, %v795
    %v809 = vlog2.pop %v757
    %v810 = vmul.f32 %v809, 0.6931472
    %v811 = vlog2.pop %v758
    %v812 = vmul.f32 %v811, 0.6931472
    %v813 = vlog2.pop %v759
    %v814 = vmul.f32 %v813, 0.6931472
    %v815 = vlog2.pop %v760
    %v816 = vmul.f32 %v815, 0.6931472
    %v817 = vlog2.pop %v761
    %v818 = vmul.f32 %v817, 0.6931472
    %v819 = vlog2.pop %v762
    %v820 = vmul.f32 %v819, 0.6931472
    %v821 = vlog2.pop %v763
    %v822 = vmul.f32 %v821, 0.6931472
    %v823 = vlog2.pop %v764
    %v824 = vmul.f32 %v823, 0.6931472
    %v825 = vlog2.pop %v765
    %v826 = vmul.f32 %v825, 0.6931472
    %v827 = vlog2.pop %v766
    %v828 = vmul.f32 %v827, 0.6931472
    %v829 = vlog2.pop %v767
    %v830 = vmul.f32 %v829, 0.6931472
    %v831 = vlog2.pop %v768
    %v832 = vmul.f32 %v831, 0.6931472
    %v833 = vlog2.pop %v769
    %v834 = vmul.f32 %v833, 0.6931472
    %v835 = vadd.f32 %v796, %v810
    %v836 = vadd.f32 %v797, %v812
    %v837 = vadd.f32 %v798, %v814
    %v838 = vadd.f32 %v799, %v816
    %v839 = vadd.f32 %v800, %v818
    %v840 = vadd.f32 %v801, %v820
    %v841 = vadd.f32 %v802, %v822
    %v842 = vadd.f32 %v803, %v824
    %v843 = vadd.f32 %v804, %v826
    %v844 = vadd.f32 %v805, %v828
    %v845 = vadd.f32 %v806, %v830
    %v846 = vadd.f32 %v807, %v832
    %v847 = vadd.f32 %v808, %v834
    %v848 = vrcp.pop %v757
    %v849 = vrcp.pop %v758
    %v850 = vrcp.pop %v759
    %v851 = vrcp.pop %v760
    %v852 = vrcp.pop %v761
    %v853 = vrcp.pop %v762
    %v854 = vrcp.pop %v763
    %v855 = vrcp.pop %v764
    %v856 = vrcp.pop %v765
    %v857 = vrcp.pop %v766
    %v858 = vrcp.pop %v767
    %v859 = vrcp.pop %v768
    %v860 = vrcp.pop %v769
    %vm861 = vcmp.ge.f32.partialorder %v482, 0.0
    %vm862 = vcmp.ge.f32.partialorder %v483, 0.0
    %vm863 = vcmp.ge.f32.partialorder %v484, 0.0
    %vm864 = vcmp.ge.f32.partialorder %v485, 0.0
    %vm865 = vcmp.ge.f32.partialorder %v486, 0.0
    %vm866 = vcmp.ge.f32.partialorder %v487, 0.0
    %vm867 = vcmp.ge.f32.partialorder %v488, 0.0
    %vm868 = vcmp.ge.f32.partialorder %v489, 0.0
    %vm869 = vcmp.ge.f32.partialorder %v490, 0.0
    %vm870 = vcmp.ge.f32.partialorder %v491, 0.0
    %vm871 = vcmp.ge.f32.partialorder %v492, 0.0
    %vm872 = vcmp.ge.f32.partialorder %v493, 0.0
    %vm873 = vcmp.ge.f32.partialorder %v494, 0.0
    %v874 = vsub.f32 1.0, %v848
    %v875 = vsub.f32 1.0, %v849
    %v876 = vsub.f32 1.0, %v850
    %v877 = vsub.f32 1.0, %v851
    %v878 = vsub.f32 1.0, %v852
    %v879 = vsub.f32 1.0, %v853
    %v880 = vsub.f32 1.0, %v854
    %v881 = vsub.f32 1.0, %v855
    %v882 = vsub.f32 1.0, %v856
    %v883 = vsub.f32 1.0, %v857
    %v884 = vsub.f32 1.0, %v858
    %v885 = vsub.f32 1.0, %v859
    %v886 = vsub.f32 1.0, %v860
    %v887 = vsel %vm861, %v848, %v874
    %v888 = vsel %vm862, %v849, %v875
    %v889 = vsel %vm863, %v850, %v876
    %v890 = vsel %vm864, %v851, %v877
    %v891 = vsel %vm865, %v852, %v878
    %v892 = vsel %vm866, %v853, %v879
    %v893 = vsel %vm867, %v854, %v880
    %v894 = vsel %vm868, %v855, %v881
    %v895 = vsel %vm869, %v856, %v882
    %v896 = vsel %vm870, %v857, %v883
    %v897 = vsel %vm871, %v858, %v884
    %v898 = vsel %vm872, %v859, %v885
    %v899 = vsel %vm873, %v860, %v886
    %vm900 = vcmp.gt.f32.partialorder %v692, 0.5
    %vm901 = vcmp.gt.f32.partialorder %v693, 0.5
    %vm902 = vcmp.gt.f32.partialorder %v694, 0.5
    %vm903 = vcmp.gt.f32.partialorder %v695, 0.5
    %vm904 = vcmp.gt.f32.partialorder %v696, 0.5
    %vm905 = vcmp.gt.f32.partialorder %v697, 0.5
    %vm906 = vcmp.gt.f32.partialorder %v698, 0.5
    %vm907 = vcmp.gt.f32.partialorder %v699, 0.5
    %vm908 = vcmp.gt.f32.partialorder %v700, 0.5
    %vm909 = vcmp.gt.f32.partialorder %v701, 0.5
    %vm910 = vcmp.gt.f32.partialorder %v702, 0.5
    %vm911 = vcmp.gt.f32.partialorder %v703, 0.5
    %vm912 = vcmp.gt.f32.partialorder %v704, 0.5
    %v913 = vsub.f32 1.0, %v887
    %v914 = vsub.f32 1.0, %v888
    %v915 = vsub.f32 1.0, %v889
    %v916 = vsub.f32 1.0, %v890
    %v917 = vsub.f32 1.0, %v891
    %v918 = vsub.f32 1.0, %v892
    %v919 = vsub.f32 1.0, %v893
    %v920 = vsub.f32 1.0, %v894
    %v921 = vsub.f32 1.0, %v895
    %v922 = vsub.f32 1.0, %v896
    %v923 = vsub.f32 1.0, %v897
    %v924 = vsub.f32 1.0, %v898
    %v925 = vsub.f32 1.0, %v899
    %v926 = vsel %vm900, %v887, %v913
    %v927 = vsel %vm901, %v888, %v914
    %v928 = vsel %vm902, %v889, %v915
    %v929 = vsel %vm903, %v890, %v916
    %v930 = vsel %vm904, %v891, %v917
    %v931 = vsel %vm905, %v892, %v918
    %v932 = vsel %vm906, %v893, %v919
    %v933 = vsel %vm907, %v894, %v920
    %v934 = vsel %vm908, %v895, %v921
    %v935 = vsel %vm909, %v896, %v922
    %v936 = vsel %vm910, %v897, %v923
    %v937 = vsel %vm911, %v898, %v924
    %v938 = vsel %vm912, %v899, %v925
    %v939 = vsub.f32 1.0, %v692
    %v940 = vsub.f32 1.0, %v693
    %v941 = vsub.f32 1.0, %v694
    %v942 = vsub.f32 1.0, %v695
    %v943 = vsub.f32 1.0, %v696
    %v944 = vsub.f32 1.0, %v697
    %v945 = vsub.f32 1.0, %v698
    %v946 = vsub.f32 1.0, %v699
    %v947 = vsub.f32 1.0, %v700
    %v948 = vsub.f32 1.0, %v701
    %v949 = vsub.f32 1.0, %v702
    %v950 = vsub.f32 1.0, %v703
    %v951 = vsub.f32 1.0, %v704
    %v952 = vmul.f32 %v939, 0.7
    %v953 = vmul.f32 %v940, 0.7
    %v954 = vmul.f32 %v941, 0.7
    %v955 = vmul.f32 %v942, 0.7
    %v956 = vmul.f32 %v943, 0.7
    %v957 = vmul.f32 %v944, 0.7
    %v958 = vmul.f32 %v945, 0.7
    %v959 = vmul.f32 %v946, 0.7
    %v960 = vmul.f32 %v947, 0.7
    %v961 = vmul.f32 %v948, 0.7
    %v962 = vmul.f32 %v949, 0.7
    %v963 = vmul.f32 %v950, 0.7
    %v964 = vmul.f32 %v951, 0.7
    %v965 = vmul.f32 %v692, 0.3
    %v966 = vmul.f32 %v693, 0.3
    %v967 = vmul.f32 %v694, 0.3
    %v968 = vmul.f32 %v695, 0.3
    %v969 = vmul.f32 %v696, 0.3
    %v970 = vmul.f32 %v697, 0.3
    %v971 = vmul.f32 %v698, 0.3
    %v972 = vmul.f32 %v699, 0.3
    %v973 = vmul.f32 %v700, 0.3
    %v974 = vmul.f32 %v701, 0.3
    %v975 = vmul.f32 %v702, 0.3
    %v976 = vmul.f32 %v703, 0.3
    %v977 = vmul.f32 %v704, 0.3
    %v978 = vadd.f32 %v952, %v965
    %v979 = vadd.f32 %v953, %v966
    %v980 = vadd.f32 %v954, %v967
    %v981 = vadd.f32 %v955, %v968
    %v982 = vadd.f32 %v956, %v969
    %v983 = vadd.f32 %v957, %v970
    %v984 = vadd.f32 %v958, %v971
    %v985 = vadd.f32 %v959, %v972
    %v986 = vadd.f32 %v960, %v973
    %v987 = vadd.f32 %v961, %v974
    %v988 = vadd.f32 %v962, %v975
    %v989 = vadd.f32 %v963, %v976
    %v990 = vadd.f32 %v964, %v977
    %v991 = vsub.f32 1.0, %v926
    %v992 = vsub.f32 1.0, %v927
    %v993 = vsub.f32 1.0, %v928
    %v994 = vsub.f32 1.0, %v929
    %v995 = vsub.f32 1.0, %v930
    %v996 = vsub.f32 1.0, %v931
    %v997 = vsub.f32 1.0, %v932
    %v998 = vsub.f32 1.0, %v933
    %v999 = vsub.f32 1.0, %v934
    %v1000 = vsub.f32 1.0, %v935
    %v1001 = vsub.f32 1.0, %v936
    %v1002 = vsub.f32 1.0, %v937
    %v1003 = vsub.f32 1.0, %v938
    %v1004 = vmul.f32 %v978, %v991
    %v1005 = vmul.f32 %v979, %v992
    %v1006 = vmul.f32 %v980, %v993
    %v1007 = vmul.f32 %v981, %v994
    %v1008 = vmul.f32 %v982, %v995
    %v1009 = vmul.f32 %v983, %v996
    %v1010 = vmul.f32 %v984, %v997
    %v1011 = vmul.f32 %v985, %v998
    %v1012 = vmul.f32 %v986, %v999
    %v1013 = vmul.f32 %v987, %v1000
    %v1014 = vmul.f32 %v988, %v1001
    %v1015 = vmul.f32 %v989, %v1002
    %v1016 = vmul.f32 %v990, %v1003
    %v1017 = vmul.f32 %v1004, %v991
    %v1018 = vmul.f32 %v1005, %v992
    %v1019 = vmul.f32 %v1006, %v993
    %v1020 = vmul.f32 %v1007, %v994
    %v1021 = vmul.f32 %v1008, %v995
    %v1022 = vmul.f32 %v1009, %v996
    %v1023 = vmul.f32 %v1010, %v997
    %v1024 = vmul.f32 %v1011, %v998
    %v1025 = vmul.f32 %v1012, %v999
    %v1026 = vmul.f32 %v1013, %v1000
    %v1027 = vmul.f32 %v1014, %v1001
    %v1028 = vmul.f32 %v1015, %v1002
    %v1029 = vmul.f32 %v1016, %v1003
    %v1030 = vmul.f32 %v1017, %v835
    %v1031 = vmul.f32 %v1018, %v836
    %v1032 = vmul.f32 %v1019, %v837
    %v1033 = vmul.f32 %v1020, %v838
    %v1034 = vmul.f32 %v1021, %v839
    %v1035 = vmul.f32 %v1022, %v840
    %v1036 = vmul.f32 %v1023, %v841
    %v1037 = vmul.f32 %v1024, %v842
    %v1038 = vmul.f32 %v1025, %v843
    %v1039 = vmul.f32 %v1026, %v844
    %v1040 = vmul.f32 %v1027, %v845
    %v1041 = vmul.f32 %v1028, %v846
    %v1042 = vmul.f32 %v1029, %v847
    %v1043 = vld [vmem:[%s6] sm:$0x1]
    %v1045 = vlaneseq
    %v1046 = vshrl.u32 %v1045, 7
    %v1047 = vsub.s32 0, %v1046
    %v1048 = vrot.slane %v1043, %v1047
    %v1050 = vmul.f32 %v1030, %v1048
    %v1051 = vmul.f32 %v1031, %v1048
    %v1052 = vmul.f32 %v1032, %v1048
    %v1053 = vmul.f32 %v1033, %v1048
    %v1054 = vmul.f32 %v1034, %v1048
    %v1055 = vmul.f32 %v1035, %v1048
    %v1056 = vmul.f32 %v1036, %v1048
    %v1057 = vmul.f32 %v1037, %v1048
    %v1058 = vmul.f32 %v1038, %v1048
    %v1059 = vmul.f32 %v1039, %v1048
    %v1060 = vmul.f32 %v1040, %v1048
    %v1061 = vmul.f32 %v1041, %v1048
    %v1062 = vmul.f32 %v1042, %v1048
    %v1063 = vsel %vm547, %v1050, 0.0
    %v1064 = vsel %vm547, %v1051, 0.0
    %v1065 = vadd.f32 %v1063, %v1064
    %v1066 = vsel %vm547, %v1052, 0.0
    %v1067 = vadd.f32 %v1065, %v1066
    %v1068 = vsel %vm547, %v1053, 0.0
    %v1069 = vadd.f32 %v1067, %v1068
    %v1070 = vsel %vm547, %v1054, 0.0
    %v1071 = vadd.f32 %v1069, %v1070
    %v1072 = vsel %vm547, %v1055, 0.0
    %v1073 = vadd.f32 %v1071, %v1072
    %v1074 = vsel %vm547, %v1056, 0.0
    %v1075 = vadd.f32 %v1073, %v1074
    %v1076 = vsel %vm547, %v1057, 0.0
    %v1077 = vadd.f32 %v1075, %v1076
    %v1078 = vsel %vm547, %v1058, 0.0
    %v1079 = vadd.f32 %v1077, %v1078
    %v1080 = vsel %vm547, %v1059, 0.0
    %v1081 = vadd.f32 %v1079, %v1080
    %v1082 = vsel %vm547, %v1060, 0.0
    %v1083 = vadd.f32 %v1081, %v1082
    %v1084 = vsel %vm547, %v1061, 0.0
    %v1085 = vadd.f32 %v1083, %v1084
    %v1086 = vsel %vm632, %v1062, 0.0
    %v1087 = vadd.f32 %v1085, %v1086
    %1088 = vadd.xlane.f32.xlu0 %v1087
    %v1089 = vpop.xlane.xlu0 %1088
    %v1090 = vrot.slane %v1089, 4
    %v1091 = vadd.f32 %v1089, %v1090
    %v1092 = vrot.slane %v1091, 2
    %v1093 = vadd.f32 %v1091, %v1092
    %v1094 = vrot.slane %v1093, 1
    %v1095 = vadd.f32 %v1093, %v1094
    %s1096 = vtos %v1095
    %v1097 = vrcp.pop 10000.0
    %s1098 = vtos %v1097
    %s1099 = smul.f32 %s1096, %s1098
    %s1100 = scalar_lea.smem [#allocation2], 0
    %1101 = sst [smem:[%s1100]] %s172
    %s1102 = scalar_lea.smem [#allocation2], 1
    %1103 = sst [smem:[%s1102]] %s481
    %s1104 = scalar_lea.smem [#allocation2], 2
    %1105 = sst [smem:[%s1104]] %s1099
    // Predicated region
    $region30: #{set_criterion_forward.1} parent=1 // pred_check
      _
    $region31: #{set_criterion_forward.1} parent=1 // pred_check_branch
      %1107 = sbr.rel (0) target = $region33
    $region32: #{set_criterion_forward.1} parent=1 // pred_region
      %s1109 = ssub.s32 16, 16
      %1110 = vsyncadd [#allocation3], %s1109
      %s1112 = sshll.u32 %s7, 4
      %s1113 = int_to_ptr.vmem [resolvable:$true] %s1112
      %1115 = dma.smem_to_vmem [#allocation2], 16, %s1113, [#allocation3]
    $region33: #{set_criterion_forward.1} parent=1 // pred_fallthru
      _
    // Predicated region
    $region34: #{set_criterion_forward.1} parent=1 // pred_check
      _
    $region35: #{set_criterion_forward.1} parent=1 // pred_check_branch
      %1117 = sbr.rel (0) target = $region37
    $region36: #{set_criterion_forward.1} parent=1 // pred_region
      %1118 = dma.done [#allocation3], 16
    $region37: #{set_criterion_forward.1} parent=1 // pred_fallthru
      _
    %1119 = sfence
    %1120 = vsyncpa [#allocation3], 1

</llo_original>
